<compile_context>
chip_gen: v7x
topology: tpu7x:2x2x1
jax: 0.10.0
libtpu: 0.0.40
codegen_flags: <defaults>
</compile_context>

<pallas_src>
import functools

import jax
import jax.numpy as jnp
from jax.experimental import pallas as pl
from jax.experimental.pallas import tpu as pltpu


def _up_conv_kernel(x_ref, w_ref, scale_ref, shift_ref, o_ref, *, B, H, WC2):
    """One grid step = B whole images.

    x_ref:     (B, H+2, WC2)   zero-padded original-res rows, (w_pad, cin)
                               flattened into the lane dim, WC2 = (W+2)*Cin
    w_ref:     (3, WC2, NOUT)  per-row-tap, column/phase-folded weights,
                               NOUT = 4*W*Cout, columns ordered (a, 2j+b, cout)
    scale_ref: (1, NOUT)       BN scale per output column (f32)
    shift_ref: (1, NOUT)       conv bias + BN shift per output column (f32)
    o_ref:     (B*H, NOUT)     output row = img*H + i, columns as above
    """
    TM = B * H
    acc = None
    # Row taps: padded input rows i+0, i+1, i+2 cover both output row phases.
    # Each tap is one big lane-dense matmul; the u=1/2 row-offset loads are the
    # only (one-off, per-tile) sublane shifts left in the kernel.
    for u in range(3):
        lhs = x_ref[:, u:u + H, :].reshape(TM, WC2)
        part = jnp.dot(lhs, w_ref[u], preferred_element_type=jnp.float32)
        acc = part if acc is None else acc + part
    # f32 epilogue: BN scale, fused (conv bias + BN shift), ReLU.
    # Broadcasts happen exactly once per tile.
    acc = acc * scale_ref[...] + shift_ref[...]
    o_ref[...] = jnp.maximum(acc, 0.0).astype(o_ref.dtype)


def _fold_weights(weight, bias, gamma, beta, running_mean, running_var, eps,
                  W, compute_dtype):
    """Phase-decompose the 3x3 kernel for the 2x nearest upsample and expand it
    to lane-dense, padded-column-indexed matrices.  BN scale/shift stay f32 and
    are applied in the kernel epilogue (not folded into low-precision weights).
    """
    Cout, Cin, _, _ = weight.shape
    w = weight.astype(jnp.float32)
    if bias is None:                       # support Conv2d(bias=False)
        bias = jnp.zeros((Cout,), jnp.float32)

    # BatchNorm (eval):  y = conv * scale + ((bias - mean) * scale + beta)
    scale = gamma / jnp.sqrt(running_var + eps)            # (Cout,)
    shift = (bias - running_mean) * scale + beta           # (Cout,)

    # Phase fold: output pixel (2i+a, 2j+b) of the 3x3 conv on the nearest-2x
    # upsampled grid equals a 2x2 conv over the zero-padded original input:
    #   y[2i+a, 2j+b] = sum_{u,v} K[a,b,u,v] . xpad[i+a+u, j+b+v]
    K = jnp.zeros((2, 2, 2, 2, Cin, Cout), jnp.float32)
    for a in range(2):
        for b in range(2):
            for dy in range(3):
                u = (dy + 1 - a) // 2
                for dx in range(3):
                    v = (dx + 1 - b) // 2
                    K = K.at[a, b, u, v].add(w[:, :, dy, dx].T)   # (Cin, Cout)

    # Column-tap fold + phase packing: for each row tap u (padded row i+u),
    # build BW[u] of shape ((W+2)*Cin, 4*W*Cout) such that a full padded input
    # row contracted against it yields BOTH row phases, with output columns
    # ordered (a, q=2j+b, cout):
    #   BW[u][cpad*Cin+ci, a*2W*Cout + (2j+b)*Cout + co]
    #       = K[a, b, u-a, cpad-j-b, ci, co]   if 0<=u-a<=1 and 0<=cpad-j-b<=1
    Wp = W + 2
    BW = jnp.zeros((3, Wp, Cin, 2, W, 2, Cout), jnp.float32)
    for u in range(3):
        for a in range(2):
            ua = u - a
            if not 0 <= ua <= 1:
                continue
            for b in range(2):
                for v in range(2):
                    sel = jnp.eye(Wp, W, k=-(b + v), dtype=jnp.float32)
                    BW = BW.at[u, :, :, a, :, b, :].add(
                        jnp.einsum('pj,io->pijo', sel, K[a, b, ua, v]))
    NOUT = 4 * W * Cout
    BW = BW.reshape(3, Wp * Cin, NOUT).astype(compute_dtype)

    scale_vec = jnp.tile(scale, 4 * W).reshape(1, NOUT).astype(jnp.float32)
    shift_vec = jnp.tile(shift, 4 * W).reshape(1, NOUT).astype(jnp.float32)
    return BW, scale_vec, shift_vec


def _pick_images_per_step(n, h, target_m_rows):
    """Largest divisor B of n with B*h <= target_m_rows, while keeping >= 2
    grid steps when n > 1 (v7x has 2 TensorCores; also keeps pipelining live)."""
    best = 1
    for b in range(1, n + 1):
        if n % b:
            continue
        if n > 1 and n // b < 2:
            continue
        if b * h <= target_m_rows:
            best = max(best, b)
    return best


def up_conv_forward(x_nchw, weight, bias, gamma, beta, running_mean,
                    running_var, eps=1e-5, compute_dtype=jnp.bfloat16,
                    out_dtype=jnp.float32, target_m_rows=128,
                    channels_last=False):
    """up_conv forward.  x_nchw: (N, Cin, H, W) -> (N, Cout, 2H, 2W)
    (or (N, 2H, 2W, Cout) NHWC if channels_last=True)."""
    N, Cin, H, W = x_nchw.shape
    Cout = weight.shape[0]
    WC2 = (W + 2) * Cin
    NOUT = 4 * W * Cout

    bw, scale_vec, shift_vec = _fold_weights(
        weight, bias, gamma, beta, running_mean, running_var, eps, W,
        compute_dtype)

    # Input prep: one cheap XLA pass over the small ORIGINAL-resolution input
    # (NCHW -> NHWC, zero-pad spatial by 1, flatten (w, cin) into the lane dim).
    # The upsampled tensor never exists in HBM or VMEM.
    x = jnp.transpose(x_nchw, (0, 2, 3, 1))                 # (N, H, W, Cin)
    x = jnp.pad(x, ((0, 0), (1, 1), (1, 1), (0, 0)))        # (N, H+2, W+2, Cin)
    xf = x.reshape(N, H + 2, WC2).astype(compute_dtype)

    # Batch blocking: B images per grid step -> M = B*H matmul rows.
    B = _pick_images_per_step(N, H, target_m_rows)
    TM = B * H
    grid = (N // B,)

    kernel = functools.partial(_up_conv_kernel, B=B, H=H, WC2=WC2)

    out = pl.pallas_call(
        kernel,
        out_shape=jax.ShapeDtypeStruct((N * H, NOUT), out_dtype),
        grid_spec=pltpu.PrefetchScalarGridSpec(
            num_scalar_prefetch=0,
            grid=grid,
            in_specs=[
                pl.BlockSpec((B, H + 2, WC2), lambda m: (m, 0, 0)),
                # Constant index_map -> weights stay VMEM-resident (~2x220 KiB
                # double-buffered here, trivial on all generations).  When
                # scaling W/C toward v7x's 64 MiB VMEM, tile channels to 128
                # and/or set pipeline_mode=pl.Buffered(1) on this spec.
                pl.BlockSpec((3, WC2, NOUT), lambda m: (0, 0, 0)),
                pl.BlockSpec((1, NOUT), lambda m: (0, 0)),
                pl.BlockSpec((1, NOUT), lambda m: (0, 0)),
            ],
            out_specs=pl.BlockSpec((TM, NOUT), lambda m: (m, 0)),
        ),
        compiler_params=pltpu.CompilerParams(
            dimension_semantics=("parallel",)),
    )(xf, bw, scale_vec, shift_vec)

    # Free metadata reshapes only: (N*H, 4*W*Cout) with columns (a, q, c)
    #   -> (N, H, 2, 2W, Cout) -> (N, 2H, 2W, Cout)   (row p = 2i + a)  = NHWC
    out = out.reshape(N, H, 2, 2 * W, Cout).reshape(N, 2 * H, 2 * W, Cout)
    if channels_last:
        return out
    # Single remaining data-movement pass, forced by the module's NCHW contract.
    return jnp.transpose(out, (0, 3, 1, 2))


def _reference_forward(x_nchw, weight, bias, gamma, beta, running_mean,
                       running_var, eps=1e-5):
    """Pure-JAX reference (NCHW conv) for correctness checking."""
    x = jnp.repeat(jnp.repeat(x_nchw, 2, axis=2), 2, axis=3)
    y = jax.lax.conv_general_dilated(
        x, weight, window_strides=(1, 1), padding=((1, 1), (1, 1)),
        dimension_numbers=("NCHW", "OIHW", "NCHW"))
    y = y + bias[None, :, None, None]
    scale = gamma / jnp.sqrt(running_var + eps)
    shift = beta - running_mean * scale
    y = y * scale[None, :, None, None] + shift[None, :, None, None]
    return jnp.maximum(y, 0.0)


if __name__ == "__main__":
    key = jax.random.PRNGKey(0)
    kx, kw, kb, kg, kbe, km, kv = jax.random.split(key, 7)

    N, Cin, Cout, H, W = 2, 4, 8, 16, 16   # upsampled spatial = 32x32

    x = jax.random.normal(kx, (N, Cin, H, W), dtype=jnp.float32)
    weight = 0.1 * jax.random.normal(kw, (Cout, Cin, 3, 3), dtype=jnp.float32)
    bias = 0.1 * jax.random.normal(kb, (Cout,), dtype=jnp.float32)
    gamma = 1.0 + 0.1 * jax.random.normal(kg, (Cout,), dtype=jnp.float32)
    beta = 0.1 * jax.random.normal(kbe, (Cout,), dtype=jnp.float32)
    running_mean = 0.1 * jax.random.normal(km, (Cout,), dtype=jnp.float32)
    running_var = jnp.abs(1.0 + 0.1 * jax.random.normal(kv, (Cout,),
                                                        dtype=jnp.float32))

    ref = _reference_forward(x, weight, bias, gamma, beta, running_mean,
                             running_var)

    # f32 compute / f32 output: tight-tolerance check against lax.conv.
    out_f32 = up_conv_forward(x, weight, bias, gamma, beta, running_mean,
                              running_var, compute_dtype=jnp.float32,
                              out_dtype=jnp.float32)
    out_f32 = jax.block_until_ready(out_f32)
    assert out_f32.shape == (N, Cout, 2 * H, 2 * W), out_f32.shape
    assert jnp.allclose(out_f32, ref, atol=1e-4, rtol=1e-4), "f32 mismatch"

    # bf16 MXU operands + bf16 output (f32 accumulation/epilogue): fast path.
    out_bf16 = up_conv_forward(x, weight, bias, gamma, beta, running_mean,
                               running_var, compute_dtype=jnp.bfloat16,
                               out_dtype=jnp.bfloat16)
    out_bf16 = jax.block_until_ready(out_bf16)
    assert jnp.allclose(out_bf16.astype(jnp.float32), ref,
                        atol=3e-2, rtol=3e-2), "bf16 mismatch"

    print("KERNEL_OK")
</pallas_src>

<mosaic_0001>
module attributes {stable_mosaic.version = 11 : i64} {
  func.func @_up_conv_kernel(%arg0: i32, %arg1: memref<1x18x72xf32, #tpu.memory_space<vmem>>, %arg2: memref<3x72x512xf32, #tpu.memory_space<vmem>>, %arg3: memref<1x512xf32, #tpu.memory_space<vmem>>, %arg4: memref<1x512xf32, #tpu.memory_space<vmem>>, %arg5: memref<16x512xf32, #tpu.memory_space<vmem>>) attributes {dimension_semantics = [#tpu.dimension_semantics<parallel>], iteration_bounds = array<i64: 2>, scalar_prefetch = 0 : i64, scratch_operands = 0 : i64, tpu.core_type = #tpu.core_type<tc>, window_params = [{transform_indices = @transform_0, window_bounds = array<i64: 1, 18, 72>}, {pipeline_mode = #tpu.pipeline_mode<synchronous>, transform_indices = @transform_1, window_bounds = array<i64: 3, 72, 512>}, {pipeline_mode = #tpu.pipeline_mode<synchronous>, transform_indices = @transform_2, window_bounds = array<i64: 1, 512>}, {pipeline_mode = #tpu.pipeline_mode<synchronous>, transform_indices = @transform_3, window_bounds = array<i64: 1, 512>}, {transform_indices = @transform_4, window_bounds = array<i64: 16, 512>}]} {
    %c0 = arith.constant 0 : index
    %c0_0 = arith.constant 0 : index
    %c0_1 = arith.constant 0 : index
    %0 = vector.load %arg1[%c0, %c0_0, %c0_1] : memref<1x18x72xf32, #tpu.memory_space<vmem>>, vector<1x16x72xf32>
    %1 = vector.shape_cast %0 : vector<1x16x72xf32> to vector<16x72xf32>
    %c0_2 = arith.constant 0 : index
    %c0_3 = arith.constant 0 : index
    %c0_4 = arith.constant 0 : index
    %2 = vector.load %arg2[%c0_2, %c0_3, %c0_4] : memref<3x72x512xf32, #tpu.memory_space<vmem>>, vector<1x72x512xf32>
    %3 = vector.shape_cast %2 : vector<1x72x512xf32> to vector<72x512xf32>
    %cst = arith.constant dense<0.000000e+00> : vector<16x512xf32>
    %4 = tpu.matmul %1, %3, %cst {dimension_numbers = #tpu.dot_dimension_numbers<[1], [0], [0], [1], [0, 0, 1, 1], [], []>} : vector<16x72xf32>, vector<72x512xf32>, vector<16x512xf32> -> vector<16x512xf32>
    %c0_5 = arith.constant 0 : index
    %c1 = arith.constant 1 : index
    %c0_6 = arith.constant 0 : index
    %5 = vector.load %arg1[%c0_5, %c1, %c0_6] : memref<1x18x72xf32, #tpu.memory_space<vmem>>, vector<1x16x72xf32>
    %6 = vector.shape_cast %5 : vector<1x16x72xf32> to vector<16x72xf32>
    %c1_7 = arith.constant 1 : index
    %c0_8 = arith.constant 0 : index
    %c0_9 = arith.constant 0 : index
    %7 = vector.load %arg2[%c1_7, %c0_8, %c0_9] : memref<3x72x512xf32, #tpu.memory_space<vmem>>, vector<1x72x512xf32>
    %8 = vector.shape_cast %7 : vector<1x72x512xf32> to vector<72x512xf32>
    %cst_10 = arith.constant dense<0.000000e+00> : vector<16x512xf32>
    %9 = tpu.matmul %6, %8, %cst_10 {dimension_numbers = #tpu.dot_dimension_numbers<[1], [0], [0], [1], [0, 0, 1, 1], [], []>} : vector<16x72xf32>, vector<72x512xf32>, vector<16x512xf32> -> vector<16x512xf32>
    %10 = arith.addf %4, %9 : vector<16x512xf32>
    %c0_11 = arith.constant 0 : index
    %c2 = arith.constant 2 : index
    %c0_12 = arith.constant 0 : index
    %11 = vector.load %arg1[%c0_11, %c2, %c0_12] : memref<1x18x72xf32, #tpu.memory_space<vmem>>, vector<1x16x72xf32>
    %12 = vector.shape_cast %11 : vector<1x16x72xf32> to vector<16x72xf32>
    %c2_13 = arith.constant 2 : index
    %c0_14 = arith.constant 0 : index
    %c0_15 = arith.constant 0 : index
    %13 = vector.load %arg2[%c2_13, %c0_14, %c0_15] : memref<3x72x512xf32, #tpu.memory_space<vmem>>, vector<1x72x512xf32>
    %14 = vector.shape_cast %13 : vector<1x72x512xf32> to vector<72x512xf32>
    %cst_16 = arith.constant dense<0.000000e+00> : vector<16x512xf32>
    %15 = tpu.matmul %12, %14, %cst_16 {dimension_numbers = #tpu.dot_dimension_numbers<[1], [0], [0], [1], [0, 0, 1, 1], [], []>} : vector<16x72xf32>, vector<72x512xf32>, vector<16x512xf32> -> vector<16x512xf32>
    %16 = arith.addf %10, %15 : vector<16x512xf32>
    %c0_17 = arith.constant 0 : index
    %c0_18 = arith.constant 0 : index
    %17 = vector.load %arg3[%c0_17, %c0_18] : memref<1x512xf32, #tpu.memory_space<vmem>>, vector<1x512xf32>
    %18 = vector.broadcast %17 : vector<1x512xf32> to vector<16x512xf32>
    %19 = arith.mulf %16, %18 : vector<16x512xf32>
    %c0_19 = arith.constant 0 : index
    %c0_20 = arith.constant 0 : index
    %20 = vector.load %arg4[%c0_19, %c0_20] : memref<1x512xf32, #tpu.memory_space<vmem>>, vector<1x512xf32>
    %21 = vector.broadcast %20 : vector<1x512xf32> to vector<16x512xf32>
    %22 = arith.addf %19, %21 : vector<16x512xf32>
    %cst_21 = arith.constant 0.000000e+00 : f32
    %23 = vector.broadcast %cst_21 : f32 to vector<16x512xf32>
    %24 = arith.maximumf %22, %23 : vector<16x512xf32>
    %c0_22 = arith.constant 0 : index
    %c0_23 = arith.constant 0 : index
    %25 = vector.load %arg5[%c0_22, %c0_23] : memref<16x512xf32, #tpu.memory_space<vmem>>, vector<16x512xf32>
    tpu.vector_store %arg5[%c0_22, %c0_23], %24 {strides = array<i32>} : memref<16x512xf32, #tpu.memory_space<vmem>>, vector<16x512xf32>,
    return
  }
  func.func @transform_0(%arg0: i32) -> (i32, i32, i32) {
    %c0_i32 = arith.constant 0 : i32
    %c0_i32_0 = arith.constant 0 : i32
    %c0_i32_1 = arith.constant 0 : i32
    return %arg0, %c0_i32, %c0_i32_0 : i32, i32, i32
  }
  func.func @transform_1(%arg0: i32) -> (i32, i32, i32) {
    %c0_i32 = arith.constant 0 : i32
    %c0_i32_0 = arith.constant 0 : i32
    %c0_i32_1 = arith.constant 0 : i32
    %c0_i32_2 = arith.constant 0 : i32
    return %c0_i32, %c0_i32_0, %c0_i32_1 : i32, i32, i32
  }
  func.func @transform_2(%arg0: i32) -> (i32, i32) {
    %c0_i32 = arith.constant 0 : i32
    %c0_i32_0 = arith.constant 0 : i32
    %c0_i32_1 = arith.constant 0 : i32
    return %c0_i32, %c0_i32_0 : i32, i32
  }
  func.func @transform_3(%arg0: i32) -> (i32, i32) {
    %c0_i32 = arith.constant 0 : i32
    %c0_i32_0 = arith.constant 0 : i32
    %c0_i32_1 = arith.constant 0 : i32
    return %c0_i32, %c0_i32_0 : i32, i32
  }
  func.func @transform_4(%arg0: i32) -> (i32, i32) {
    %c0_i32 = arith.constant 0 : i32
    %c0_i32_0 = arith.constant 0 : i32
    return %arg0, %c0_i32 : i32, i32
  }
}

</mosaic_0001>

<llo_original>
// kernel: tpu_custom_call.1
$region0: #{tpu_custom_call.1}
  #allocation0 [shape = 'u32[]', space=smem, size = 0x4, offset = 0x4, fixed_abs, tag = 'smem constant byte address 0x4 - core index']
  #allocation1 [shape = 'u32[144,128]{1,0:T(1,128)}', space=vmem, size = 0x12000, scoped, tag = 'internal scratch']
  %s0 = inlined_call_operand.vmem [shape: f32[2,18,72], index: 0, kind: input, shape index: {}]
  %s1 = inlined_call_operand.hbm [shape: f32[3,72,512], index: 1, kind: input, shape index: {}]
  %s2 = inlined_call_operand.vmem [shape: f32[1,512], index: 2, kind: input, shape index: {}]
  %s3 = inlined_call_operand.vmem [shape: f32[1,512], index: 3, kind: input, shape index: {}]
  %s4 = inlined_call_operand.hbm [shape: f32[32,512], index: 4, kind: output, shape index: {}]
  %s5 = sld [smem:[#allocation0]]
  $region53: #{tpu_custom_call.1} parent=0
    _
  %s7 = ssub.s32 1, %s5
  %s8 = scalar_select 0, %s7, %s5
  $region1: #{tpu_custom_call.1} parent=0
    #allocation2 [shape = 'u8[442368]{0}', space=vmem, size = 0x6c000, scoped, tag = 'input window, operand 1, single buffered']
    #allocation3 [shape = 's32[2]{0}', space=sflag, size = 0x8, scoped, tag = 'scoped memory for tpu_custom_call.1']
    #allocation4 [shape = 's32[2]{0}', space=sflag, size = 0x8, scoped, tag = 'scoped memory for tpu_custom_call.1']
    #allocation5 [shape = 'u8[65536]{0}', space=vmem, size = 0x10000, scoped, tag = 'output window, operand 0']
    %9 = vsyncpa [#allocation3], 0
    %10 = vsyncpa [#allocation4], 0
    %s11 = scalar_lea.sflag [#allocation4], 1
    %12 = vsyncpa %s11, 0
    loop: start=0, step=1, limit=4
    $region2: #{tpu_custom_call.1} parent=1 // loop_pre_header
      _
    $region3: #{tpu_custom_call.1} parent=1 // loop_header
      %s14 = sphi 0, %s18
      %p15 = scmp.ge.s32.totalorder %s14, 4
      %s24 = sphi 0, %s26
      %s27 = sphi 0, %s24
      %s28 = sphi 0, %s27
      %s44 = sphi 0, %s28
      %s48 = sphi 0, %s48
      %s50 = sphi 0, %s48
      %s51 = sphi 0, %s50
      %s65 = sphi 0, %s51
      %s69 = sphi 0, %s69
      %s71 = sphi 0, %s69
      %s72 = sphi 0, %s71
      %s86 = sphi 0, %s72
      %s90 = sphi 0, %s90
      %s92 = sphi 0, %s90
      %s93 = sphi 0, %s92
      %s107 = sphi 0, %s93
      %s113 = sphi 0, %s115
      %s116 = sphi 0, %s113
      %s117 = sphi 0, %s116
      %s133 = sphi 0, %s117
    $region4: #{tpu_custom_call.1} parent=1 // loop_header_branch
      %17 = sbr.rel (%p15) target = $region8
    $region5: #{tpu_custom_call.1} parent=1 // loop_body
      %s19 = ssub.s32 %s14, 1
      %s20 = ssub.s32 %s14, 2
      %s21 = sadd.s32 %s14, 1
      %s22 = ssub.s32 %s14, %s21
      %p23 = scmp.eq.s32.totalorder %s22, 0
      %s25 = sadd.s32 %s24, 1
      %s26 = scalar_select %p23, %s24, %s25
      %p29 = pneg %p23
      %p30 = scmp.eq.s32.totalorder %s14, 1
      %p31 = por %p29, %p30
      %p32 = scmp.ne.s32.totalorder %s24, %s27
      %p33 = scmp.eq.s32.totalorder %s14, 0
      %p34 = por %p32, %p33
      %p35 = scmp.ne.s32.totalorder %s24, %s27
      %p36 = scmp.eq.s32.totalorder %s19, 1
      %p37 = por %p35, %p36
      %p38 = scmp.ne.s32.totalorder %s27, %s28
      %p39 = scmp.eq.s32.totalorder %s19, 0
      %p40 = por %p38, %p39
      %p41 = scmp.ne.s32.totalorder %s27, %s28
      %p42 = scmp.eq.s32.totalorder %s20, 1
      %p43 = por %p41, %p42
      %p45 = scmp.ne.s32.totalorder %s28, %s44
      %p46 = scmp.eq.s32.totalorder %s20, 0
      %p47 = por %p45, %p46
      %s49 = sadd.s32 %s48, 1
      %p52 = scmp.eq.s32.totalorder %s14, 1
      %p53 = scmp.ne.s32.totalorder %s48, %s50
      %p54 = scmp.eq.s32.totalorder %s14, 0
      %p55 = por %p53, %p54
      %p56 = scmp.ne.s32.totalorder %s48, %s50
      %p57 = scmp.eq.s32.totalorder %s19, 1
      %p58 = por %p56, %p57
      %p59 = scmp.ne.s32.totalorder %s50, %s51
      %p60 = scmp.eq.s32.totalorder %s19, 0
      %p61 = por %p59, %p60
      %p62 = scmp.ne.s32.totalorder %s50, %s51
      %p63 = scmp.eq.s32.totalorder %s20, 1
      %p64 = por %p62, %p63
      %p66 = scmp.ne.s32.totalorder %s51, %s65
      %p67 = scmp.eq.s32.totalorder %s20, 0
      %p68 = por %p66, %p67
      %s70 = sadd.s32 %s69, 1
      %p73 = scmp.eq.s32.totalorder %s14, 1
      %p74 = scmp.ne.s32.totalorder %s69, %s71
      %p75 = scmp.eq.s32.totalorder %s14, 0
      %p76 = por %p74, %p75
      %p77 = scmp.ne.s32.totalorder %s69, %s71
      %p78 = scmp.eq.s32.totalorder %s19, 1
      %p79 = por %p77, %p78
      %p80 = scmp.ne.s32.totalorder %s71, %s72
      %p81 = scmp.eq.s32.totalorder %s19, 0
      %p82 = por %p80, %p81
      %p83 = scmp.ne.s32.totalorder %s71, %s72
      %p84 = scmp.eq.s32.totalorder %s20, 1
      %p85 = por %p83, %p84
      %p87 = scmp.ne.s32.totalorder %s72, %s86
      %p88 = scmp.eq.s32.totalorder %s20, 0
      %p89 = por %p87, %p88
      %s91 = sadd.s32 %s90, 1
      %p94 = scmp.eq.s32.totalorder %s14, 1
      %p95 = scmp.ne.s32.totalorder %s90, %s92
      %p96 = scmp.eq.s32.totalorder %s14, 0
      %p97 = por %p95, %p96
      %p98 = scmp.ne.s32.totalorder %s90, %s92
      %p99 = scmp.eq.s32.totalorder %s19, 1
      %p100 = por %p98, %p99
      %p101 = scmp.ne.s32.totalorder %s92, %s93
      %p102 = scmp.eq.s32.totalorder %s19, 0
      %p103 = por %p101, %p102
      %p104 = scmp.ne.s32.totalorder %s92, %s93
      %p105 = scmp.eq.s32.totalorder %s20, 1
      %p106 = por %p104, %p105
      %p108 = scmp.ne.s32.totalorder %s93, %s107
      %p109 = scmp.eq.s32.totalorder %s20, 0
      %p110 = por %p108, %p109
      %s111 = ssub.s32 %s14, %s21
      %p112 = scmp.eq.s32.totalorder %s111, 0
      %s114 = sadd.s32 %s113, 1
      %s115 = scalar_select %p112, %s113, %s114
      %p118 = pneg %p112
      %p119 = scmp.eq.s32.totalorder %s14, 1
      %p120 = por %p118, %p119
      %p121 = scmp.ne.s32.totalorder %s113, %s116
      %p122 = scmp.eq.s32.totalorder %s14, 0
      %p123 = por %p121, %p122
      %p124 = scmp.ne.s32.totalorder %s113, %s116
      %p125 = scmp.eq.s32.totalorder %s19, 1
      %p126 = por %p124, %p125
      %p127 = scmp.ne.s32.totalorder %s116, %s117
      %p128 = scmp.eq.s32.totalorder %s19, 0
      %p129 = por %p127, %p128
      %p130 = scmp.ne.s32.totalorder %s116, %s117
      %p131 = scmp.eq.s32.totalorder %s20, 1
      %p132 = por %p130, %p131
      %p134 = scmp.ne.s32.totalorder %s117, %s133
      %p135 = scmp.eq.s32.totalorder %s20, 0
      %p136 = por %p134, %p135
      %p137 = scmp.le.s32.totalorder 1, %s14
      %p138 = scmp.lt.s32.totalorder %s14, 3
      %p139 = pnand %p137, %p138
      %p140 = pneg %p139
      // Predicated region
      $region9: #{tpu_custom_call.1} parent=5 // pred_check
        _
      $region10: #{tpu_custom_call.1} parent=5 // pred_check_branch
        %142 = sbr.rel (%p139) target = $region12
      $region11: #{tpu_custom_call.1} parent=5 // pred_region
        %s143 = ssub.s32 %s14, 1
        // Predicated region
        $region13: #{tpu_custom_call.1} parent=11 // pred_check
          %p144 = pneg %p61
        $region14: #{tpu_custom_call.1} parent=11 // pred_check_branch
          %146 = sbr.rel (%p144) target = $region16
        $region15: #{tpu_custom_call.1} parent=11 // pred_region
          %s148 = ssub.s32 13824, 13824
          %149 = vsyncadd [#allocation3], %s148
          %s150 = sshll.u32 [#allocation2], 4
          %s151 = int_to_ptr.vmem [resolvable:$true] %s150
          %156 = dma.hbm_to_vmem [thread:$0]  %s1, 13824, %s151, [#allocation3], 512, 512, 32
        $region16: #{tpu_custom_call.1} parent=11 // pred_fallthru
          _
        // Predicated region
        $region17: #{tpu_custom_call.1} parent=11 // pred_check
          %p157 = pneg %p82
        $region18: #{tpu_custom_call.1} parent=11 // pred_check_branch
          %159 = sbr.rel (%p157) target = $region20
        $region19: #{tpu_custom_call.1} parent=11 // pred_region
          _
        $region20: #{tpu_custom_call.1} parent=11 // pred_fallthru
          _
        // Predicated region
        $region21: #{tpu_custom_call.1} parent=11 // pred_check
          %p160 = pneg %p103
        $region22: #{tpu_custom_call.1} parent=11 // pred_check_branch
          %162 = sbr.rel (%p160) target = $region24
        $region23: #{tpu_custom_call.1} parent=11 // pred_region
          _
        $region24: #{tpu_custom_call.1} parent=11 // pred_fallthru
          _
      $region12: #{tpu_custom_call.1} parent=5 // pred_fallthru
        _
      %p163 = scmp.lt.s32.totalorder %s14, 2
      // Predicated region
      $region25: #{tpu_custom_call.1} parent=5 // pred_check
        %p164 = pneg %p163
      $region26: #{tpu_custom_call.1} parent=5 // pred_check_branch
        %166 = sbr.rel (%p164) target = $region28
      $region27: #{tpu_custom_call.1} parent=5 // pred_region
        // Predicated region
        $region29: #{tpu_custom_call.1} parent=27 // pred_check
          %p167 = pneg %p34
        $region30: #{tpu_custom_call.1} parent=27 // pred_check_branch
          %169 = sbr.rel (%p167) target = $region32
        $region31: #{tpu_custom_call.1} parent=27 // pred_region
          %p170 = scmp.lt.s32.totalorder %s14, 1
          %s171 = scalar_select %p170, %s14, 1
          %s172 = smul.addr %s171, 3
          %s173 = smul.addr %s172, 8
          %s174 = scalar_lea.vmem %s0, %s173
        $region32: #{tpu_custom_call.1} parent=27 // pred_fallthru
          _
      $region28: #{tpu_custom_call.1} parent=5 // pred_fallthru
        _
      %p175 = scmp.le.s32.totalorder 1, %s14
      %p176 = scmp.lt.s32.totalorder %s14, 3
      %p177 = pnand %p175, %p176
      %p178 = pneg %p177
      // Predicated region
      $region33: #{tpu_custom_call.1} parent=5 // pred_check
        _
      $region34: #{tpu_custom_call.1} parent=5 // pred_check_branch
        %180 = sbr.rel (%p177) target = $region36
      $region35: #{tpu_custom_call.1} parent=5 // pred_region
        %s181 = ssub.s32 %s14, 1
        // Predicated region
        $region37: #{tpu_custom_call.1} parent=35 // pred_check
          %p182 = pneg %p61
        $region38: #{tpu_custom_call.1} parent=35 // pred_check_branch
          %184 = sbr.rel (%p182) target = $region40
        $region39: #{tpu_custom_call.1} parent=35 // pred_region
          %185 = dma.done [#allocation3], 13824
        $region40: #{tpu_custom_call.1} parent=35 // pred_fallthru
          _
        %p186 = scmp.lt.s32.totalorder %s19, 1
        %s187 = scalar_select %p186, %s19, 1
        %s188 = smul.addr %s187, 3
        %s189 = smul.addr %s188, 8
        %s190 = scalar_lea.vmem %s0, %s189
        %p191 = pneg %p40
        %p192 = pneg %p37
        %p193 = pneg %p61
        %p194 = pneg %p58
        %p195 = pneg %p82
        %p196 = pneg %p79
        %p197 = pneg %p103
        %p198 = pneg %p100
        %p199 = pneg %p129
        %p200 = pneg %p126
        %s201 = sand.u32 %s116, 1
        %s202 = scalar_lea.sflag [#allocation4], %s201
        %s203 = sand.u32 %s116, 1
        %s204 = smul.addr %s203, 64
        %s205 = scalar_lea.vmem [#allocation5], %s204
        %p206 = scmp.lt.s32.totalorder %s19, 1
        %s207 = scalar_select %p206, %s19, 1
        %s208 = smul.addr %s207, 3
        %s209 = smul.addr %s208, 8
        %s210 = scalar_lea.vmem %s0, %s209
        %s211 = smul.u32 2, %s19
        %v212 = vld [vmem:[%s210] sm:$0xff]
        %v213 = vld [vmem:[%s210 + $0x8] sm:$0xff]
        %v214 = vld [vmem:[#allocation2] sm:$0xff]
        %v215 = vld [vmem:[#allocation2 + $0x8] sm:$0xff]
        %v216 = vld [vmem:[#allocation2 + $0x10] sm:$0xff]
        %v217 = vld [vmem:[#allocation2 + $0x18] sm:$0xff]
        %v218 = vld [vmem:[#allocation2 + $0x20] sm:$0xff]
        %v219 = vld [vmem:[#allocation2 + $0x28] sm:$0xff]
        %v220 = vld [vmem:[#allocation2 + $0x30] sm:$0xff]
        %v221 = vld [vmem:[#allocation2 + $0x38] sm:$0xff]
        %v222 = vld [vmem:[#allocation2 + $0x40] sm:$0xff]
        %v223 = vld [vmem:[#allocation2 + $0x48] sm:$0xff]
        %v224 = vld [vmem:[#allocation2 + $0x50] sm:$0xff]
        %v225 = vld [vmem:[#allocation2 + $0x58] sm:$0xff]
        %v226 = vld [vmem:[#allocation2 + $0x60] sm:$0xff]
        %v227 = vld [vmem:[#allocation2 + $0x68] sm:$0xff]
        %v228 = vld [vmem:[#allocation2 + $0x70] sm:$0xff]
        %v229 = vld [vmem:[#allocation2 + $0x78] sm:$0xff]
        %v230 = vld [vmem:[#allocation2 + $0x80] sm:$0xff]
        %v231 = vld [vmem:[#allocation2 + $0x88] sm:$0xff]
        %v232 = vld [vmem:[#allocation2 + $0x90] sm:$0xff]
        %v233 = vld [vmem:[#allocation2 + $0x98] sm:$0xff]
        %v234 = vld [vmem:[#allocation2 + $0xa0] sm:$0xff]
        %v235 = vld [vmem:[#allocation2 + $0xa8] sm:$0xff]
        %v236 = vld [vmem:[#allocation2 + $0xb0] sm:$0xff]
        %v237 = vld [vmem:[#allocation2 + $0xb8] sm:$0xff]
        %v238 = vld [vmem:[#allocation2 + $0xc0] sm:$0xff]
        %v239 = vld [vmem:[#allocation2 + $0xc8] sm:$0xff]
        %v240 = vld [vmem:[#allocation2 + $0xd0] sm:$0xff]
        %v241 = vld [vmem:[#allocation2 + $0xd8] sm:$0xff]
        %v242 = vld [vmem:[#allocation2 + $0xe0] sm:$0xff]
        %v243 = vld [vmem:[#allocation2 + $0xe8] sm:$0xff]
        %v244 = vld [vmem:[#allocation2 + $0xf0] sm:$0xff]
        %v245 = vld [vmem:[#allocation2 + $0xf8] sm:$0xff]
        %v246 = vld [vmem:[#allocation2 + $0x100] sm:$0xff]
        %v247 = vld [vmem:[#allocation2 + $0x108] sm:$0xff]
        %v248 = vld [vmem:[#allocation2 + $0x110] sm:$0xff]
        %v249 = vld [vmem:[#allocation2 + $0x118] sm:$0xff]
        %v250 = vld [vmem:[%s210 + $0x1] sm:$0xff]
        %v251 = vld [vmem:[%s210 + $0x9] sm:$0xff]
        %s252 = scalar_lea.vmem [#allocation2], 288
        %v253 = vld [vmem:[%s252] sm:$0xff]
        %v254 = vld [vmem:[%s252 + $0x8] sm:$0xff]
        %v255 = vld [vmem:[%s252 + $0x10] sm:$0xff]
        %v256 = vld [vmem:[%s252 + $0x18] sm:$0xff]
        %v257 = vld [vmem:[%s252 + $0x20] sm:$0xff]
        %v258 = vld [vmem:[%s252 + $0x28] sm:$0xff]
        %v259 = vld [vmem:[%s252 + $0x30] sm:$0xff]
        %v260 = vld [vmem:[%s252 + $0x38] sm:$0xff]
        %v261 = vld [vmem:[%s252 + $0x40] sm:$0xff]
        %v262 = vld [vmem:[%s252 + $0x48] sm:$0xff]
        %v263 = vld [vmem:[%s252 + $0x50] sm:$0xff]
        %v264 = vld [vmem:[%s252 + $0x58] sm:$0xff]
        %v265 = vld [vmem:[%s252 + $0x60] sm:$0xff]
        %v266 = vld [vmem:[%s252 + $0x68] sm:$0xff]
        %v267 = vld [vmem:[%s252 + $0x70] sm:$0xff]
        %v268 = vld [vmem:[%s252 + $0x78] sm:$0xff]
        %v269 = vld [vmem:[%s252 + $0x80] sm:$0xff]
        %v270 = vld [vmem:[%s252 + $0x88] sm:$0xff]
        %v271 = vld [vmem:[%s252 + $0x90] sm:$0xff]
        %v272 = vld [vmem:[%s252 + $0x98] sm:$0xff]
        %v273 = vld [vmem:[%s252 + $0xa0] sm:$0xff]
        %v274 = vld [vmem:[%s252 + $0xa8] sm:$0xff]
        %v275 = vld [vmem:[%s252 + $0xb0] sm:$0xff]
        %v276 = vld [vmem:[%s252 + $0xb8] sm:$0xff]
        %v277 = vld [vmem:[%s252 + $0xc0] sm:$0xff]
        %v278 = vld [vmem:[%s252 + $0xc8] sm:$0xff]
        %v279 = vld [vmem:[%s252 + $0xd0] sm:$0xff]
        %v280 = vld [vmem:[%s252 + $0xd8] sm:$0xff]
        %v281 = vld [vmem:[%s252 + $0xe0] sm:$0xff]
        %v282 = vld [vmem:[%s252 + $0xe8] sm:$0xff]
        %v283 = vld [vmem:[%s252 + $0xf0] sm:$0xff]
        %v284 = vld [vmem:[%s252 + $0xf8] sm:$0xff]
        %v285 = vld [vmem:[%s252 + $0x100] sm:$0xff]
        %v286 = vld [vmem:[%s252 + $0x108] sm:$0xff]
        %v287 = vld [vmem:[%s252 + $0x110] sm:$0xff]
        %v288 = vld [vmem:[%s252 + $0x118] sm:$0xff]
        %vm289 = vcmask 588800
        %v291 = vsel %vm289, %v250, 0
        %v294 = vsel %vm289, %v251, 0
        %296 = vmatprep.subr.mxu0 %v254
        %297 = vmatpush1.msra.mxu0 %v253
        %298 = vmatprep.subr.mxu0 %v258
        %299 = vmatpush1.msra.mxu0 %v257
        %300 = vmatprep.subr.mxu0 %v262
        %301 = vmatpush1.msra.mxu0 %v261
        %302 = vmatprep.subr.mxu0 %v266
        %303 = vmatpush1.msra.mxu0 %v265
        %304 = vmatprep.subr.mxu0 %v270
        %305 = vmatpush1.msra.mxu0 %v269
        %306 = vmatprep.subr.mxu0 %v274
        %307 = vmatpush1.msra.mxu0 %v273
        %308 = vmatprep.subr.mxu0 %v278
        %309 = vmatpush1.msra.mxu0 %v277
        %310 = vmatprep.subr.mxu0 %v282
        %311 = vmatpush1.msra.mxu0 %v281
        %312 = vmatprep.subr.mxu0 %v286
        %313 = vmatpush1.msra.mxu0 %v285
        %314 = vmatprep.subr.mxu0 0.0
        %315 = vmatpush1.msra.mxu0 0.0
        %316 = vmatprep.subr.mxu0 0.0
        %317 = vmatpush1.msra.mxu0 0.0
        %318 = vmatprep.subr.mxu0 0.0
        %319 = vmatpush1.msra.mxu0 0.0
        %320 = vmatprep.subr.mxu0 0.0
        %321 = vmatpush1.msra.mxu0 0.0
        %322 = vmatprep.subr.mxu0 0.0
        %323 = vmatpush1.msra.mxu0 0.0
        %324 = vmatprep.subr.mxu0 0.0
        %325 = vmatpush1.msra.mxu0 0.0
        %326 = vmatprep.subr.mxu0 0.0
        %327 = vmatpush1.msra.mxu0 0.0
        %328 = vmatprep.subr.mxu0 0.0
        %329 = vmatpush1.msra.mxu0 0.0
        %330 = vmatprep.subr.mxu0 0.0
        %331 = vmatpush1.msra.mxu0 0.0
        %332 = vmatprep.subr.mxu0 0.0
        %333 = vmatpush1.msra.mxu0 0.0
        %334 = vmatprep.subr.mxu0 0.0
        %335 = vmatpush1.msra.mxu0 0.0
        %336 = vmatprep.subr.mxu0 0.0
        %337 = vmatpush1.msra.mxu0 0.0
        %338 = vmatprep.subr.mxu0 0.0
        %339 = vmatpush1.msra.mxu0 0.0
        %340 = vmatprep.subr.mxu0 0.0
        %341 = vmatpush1.msra.mxu0 0.0
        %342 = vmatprep.subr.mxu0 0.0
        %343 = vmatpush1.msra.mxu0 0.0
        %344 = vmatprep.subr.mxu0 0.0
        %345 = vmatpush1.msra.mxu0 0.0
        %346 = vmatprep.subr.mxu0 0.0
        %347 = vmatpush1.msra.mxu0 0.0
        %348 = vmatprep.subr.mxu0 0.0
        %349 = vmatpush1.msra.mxu0 0.0
        %350 = vmatprep.subr.mxu0 0.0
        %351 = vmatpush1.msra.mxu0 0.0
        %352 = vmatprep.subr.mxu0 0.0
        %353 = vmatpush1.msra.mxu0 0.0
        %354 = vmatprep.subr.mxu0 0.0
        %355 = vmatpush1.msra.mxu0 0.0
        %356 = vmatprep.subr.mxu0 0.0
        %357 = vmatpush1.msra.mxu0 0.0
        %358 = vmatprep.subr.mxu0 0.0
        %359 = vmatpush1.msra.mxu0 0.0
        %360 = vmatprep.mubr.f32.mxu0 0.0
        %361 = vmatmul.mubr.f32.gmra.mrb[0].mxu0 %v291
        %v362 = vpop.f32.mrb[0].mxu0
        %v363 = vadd.f32 0.0, %v362
        %v364 = vpop.f32.mrb[0].mxu0
        %v365 = vadd.f32 0.0, %v364
        %366 = vmatprep.mubr.f32.mxu0 0.0
        %367 = vmatmul.mubr.f32.gmra.mrb[0].mxu0 %v294
        %v368 = vpop.f32.mrb[0].mxu0
        %v369 = vadd.f32 0.0, %v368
        %v370 = vpop.f32.mrb[0].mxu0
        %v371 = vadd.f32 0.0, %v370
        %372 = vdwg.mxu0
        %373 = vmatprep.subr.mxu0 %v256
        %374 = vmatpush1.msra.mxu0 %v255
        %375 = vmatprep.subr.mxu0 %v260
        %376 = vmatpush1.msra.mxu0 %v259
        %377 = vmatprep.subr.mxu0 %v264
        %378 = vmatpush1.msra.mxu0 %v263
        %379 = vmatprep.subr.mxu0 %v268
        %380 = vmatpush1.msra.mxu0 %v267
        %381 = vmatprep.subr.mxu0 %v272
        %382 = vmatpush1.msra.mxu0 %v271
        %383 = vmatprep.subr.mxu0 %v276
        %384 = vmatpush1.msra.mxu0 %v275
        %385 = vmatprep.subr.mxu0 %v280
        %386 = vmatpush1.msra.mxu0 %v279
        %387 = vmatprep.subr.mxu0 %v284
        %388 = vmatpush1.msra.mxu0 %v283
        %389 = vmatprep.subr.mxu0 %v288
        %390 = vmatpush1.msra.mxu0 %v287
        %391 = vmatprep.subr.mxu0 0.0
        %392 = vmatpush1.msra.mxu0 0.0
        %393 = vmatprep.subr.mxu0 0.0
        %394 = vmatpush1.msra.mxu0 0.0
        %395 = vmatprep.subr.mxu0 0.0
        %396 = vmatpush1.msra.mxu0 0.0
        %397 = vmatprep.subr.mxu0 0.0
        %398 = vmatpush1.msra.mxu0 0.0
        %399 = vmatprep.subr.mxu0 0.0
        %400 = vmatpush1.msra.mxu0 0.0
        %401 = vmatprep.subr.mxu0 0.0
        %402 = vmatpush1.msra.mxu0 0.0
        %403 = vmatprep.subr.mxu0 0.0
        %404 = vmatpush1.msra.mxu0 0.0
        %405 = vmatprep.subr.mxu0 0.0
        %406 = vmatpush1.msra.mxu0 0.0
        %407 = vmatprep.subr.mxu0 0.0
        %408 = vmatpush1.msra.mxu0 0.0
        %409 = vmatprep.subr.mxu0 0.0
        %410 = vmatpush1.msra.mxu0 0.0
        %411 = vmatprep.subr.mxu0 0.0
        %412 = vmatpush1.msra.mxu0 0.0
        %413 = vmatprep.subr.mxu0 0.0
        %414 = vmatpush1.msra.mxu0 0.0
        %415 = vmatprep.subr.mxu0 0.0
        %416 = vmatpush1.msra.mxu0 0.0
        %417 = vmatprep.subr.mxu0 0.0
        %418 = vmatpush1.msra.mxu0 0.0
        %419 = vmatprep.subr.mxu0 0.0
        %420 = vmatpush1.msra.mxu0 0.0
        %421 = vmatprep.subr.mxu0 0.0
        %422 = vmatpush1.msra.mxu0 0.0
        %423 = vmatprep.subr.mxu0 0.0
        %424 = vmatpush1.msra.mxu0 0.0
        %425 = vmatprep.subr.mxu0 0.0
        %426 = vmatpush1.msra.mxu0 0.0
        %427 = vmatprep.subr.mxu0 0.0
        %428 = vmatpush1.msra.mxu0 0.0
        %429 = vmatprep.subr.mxu0 0.0
        %430 = vmatpush1.msra.mxu0 0.0
        %431 = vmatprep.subr.mxu0 0.0
        %432 = vmatpush1.msra.mxu0 0.0
        %433 = vmatprep.subr.mxu0 0.0
        %434 = vmatpush1.msra.mxu0 0.0
        %435 = vmatprep.subr.mxu0 0.0
        %436 = vmatpush1.msra.mxu0 0.0
        %437 = vmatprep.mubr.f32.mxu0 0.0
        %438 = vmatmul.mubr.f32.gmra.mrb[0].mxu0 %v291
        %v439 = vpop.f32.mrb[0].mxu0
        %v440 = vadd.f32 0.0, %v439
        %v441 = vpop.f32.mrb[0].mxu0
        %v442 = vadd.f32 0.0, %v441
        %443 = vmatprep.mubr.f32.mxu0 0.0
        %444 = vmatmul.mubr.f32.gmra.mrb[0].mxu0 %v294
        %v445 = vpop.f32.mrb[0].mxu0
        %v446 = vadd.f32 0.0, %v445
        %v447 = vpop.f32.mrb[0].mxu0
        %v448 = vadd.f32 0.0, %v447
        %449 = vdwg.mxu0
        %v451 = vsel %vm289, %v212, 0
        %v454 = vsel %vm289, %v213, 0
        %456 = vmatprep.subr.mxu0 %v215
        %457 = vmatpush1.msra.mxu0 %v214
        %458 = vmatprep.subr.mxu0 %v219
        %459 = vmatpush1.msra.mxu0 %v218
        %460 = vmatprep.subr.mxu0 %v223
        %461 = vmatpush1.msra.mxu0 %v222
        %462 = vmatprep.subr.mxu0 %v227
        %463 = vmatpush1.msra.mxu0 %v226
        %464 = vmatprep.subr.mxu0 %v231
        %465 = vmatpush1.msra.mxu0 %v230
        %466 = vmatprep.subr.mxu0 %v235
        %467 = vmatpush1.msra.mxu0 %v234
        %468 = vmatprep.subr.mxu0 %v239
        %469 = vmatpush1.msra.mxu0 %v238
        %470 = vmatprep.subr.mxu0 %v243
        %471 = vmatpush1.msra.mxu0 %v242
        %472 = vmatprep.subr.mxu0 %v247
        %473 = vmatpush1.msra.mxu0 %v246
        %474 = vmatprep.subr.mxu0 0.0
        %475 = vmatpush1.msra.mxu0 0.0
        %476 = vmatprep.subr.mxu0 0.0
        %477 = vmatpush1.msra.mxu0 0.0
        %478 = vmatprep.subr.mxu0 0.0
        %479 = vmatpush1.msra.mxu0 0.0
        %480 = vmatprep.subr.mxu0 0.0
        %481 = vmatpush1.msra.mxu0 0.0
        %482 = vmatprep.subr.mxu0 0.0
        %483 = vmatpush1.msra.mxu0 0.0
        %484 = vmatprep.subr.mxu0 0.0
        %485 = vmatpush1.msra.mxu0 0.0
        %486 = vmatprep.subr.mxu0 0.0
        %487 = vmatpush1.msra.mxu0 0.0
        %488 = vmatprep.subr.mxu0 0.0
        %489 = vmatpush1.msra.mxu0 0.0
        %490 = vmatprep.subr.mxu0 0.0
        %491 = vmatpush1.msra.mxu0 0.0
        %492 = vmatprep.subr.mxu0 0.0
        %493 = vmatpush1.msra.mxu0 0.0
        %494 = vmatprep.subr.mxu0 0.0
        %495 = vmatpush1.msra.mxu0 0.0
        %496 = vmatprep.subr.mxu0 0.0
        %497 = vmatpush1.msra.mxu0 0.0
        %498 = vmatprep.subr.mxu0 0.0
        %499 = vmatpush1.msra.mxu0 0.0
        %500 = vmatprep.subr.mxu0 0.0
        %501 = vmatpush1.msra.mxu0 0.0
        %502 = vmatprep.subr.mxu0 0.0
        %503 = vmatpush1.msra.mxu0 0.0
        %504 = vmatprep.subr.mxu0 0.0
        %505 = vmatpush1.msra.mxu0 0.0
        %506 = vmatprep.subr.mxu0 0.0
        %507 = vmatpush1.msra.mxu0 0.0
        %508 = vmatprep.subr.mxu0 0.0
        %509 = vmatpush1.msra.mxu0 0.0
        %510 = vmatprep.subr.mxu0 0.0
        %511 = vmatpush1.msra.mxu0 0.0
        %512 = vmatprep.subr.mxu0 0.0
        %513 = vmatpush1.msra.mxu0 0.0
        %514 = vmatprep.subr.mxu0 0.0
        %515 = vmatpush1.msra.mxu0 0.0
        %516 = vmatprep.subr.mxu0 0.0
        %517 = vmatpush1.msra.mxu0 0.0
        %518 = vmatprep.subr.mxu0 0.0
        %519 = vmatpush1.msra.mxu0 0.0
        %520 = vmatprep.mubr.f32.mxu0 0.0
        %521 = vmatmul.mubr.f32.gmra.mrb[0].mxu0 %v451
        %v522 = vpop.f32.mrb[0].mxu0
        %v523 = vadd.f32 %v363, %v522
        %v524 = vpop.f32.mrb[0].mxu0
        %v525 = vadd.f32 %v365, %v524
        %526 = vmatprep.mubr.f32.mxu0 0.0
        %527 = vmatmul.mubr.f32.gmra.mrb[0].mxu0 %v454
        %v528 = vpop.f32.mrb[0].mxu0
        %v529 = vadd.f32 %v369, %v528
        %v530 = vpop.f32.mrb[0].mxu0
        %v531 = vadd.f32 %v371, %v530
        %532 = vdwg.mxu0
        %533 = vmatprep.subr.mxu0 %v217
        %534 = vmatpush1.msra.mxu0 %v216
        %535 = vmatprep.subr.mxu0 %v221
        %536 = vmatpush1.msra.mxu0 %v220
        %537 = vmatprep.subr.mxu0 %v225
        %538 = vmatpush1.msra.mxu0 %v224
        %539 = vmatprep.subr.mxu0 %v229
        %540 = vmatpush1.msra.mxu0 %v228
        %541 = vmatprep.subr.mxu0 %v233
        %542 = vmatpush1.msra.mxu0 %v232
        %543 = vmatprep.subr.mxu0 %v237
        %544 = vmatpush1.msra.mxu0 %v236
        %545 = vmatprep.subr.mxu0 %v241
        %546 = vmatpush1.msra.mxu0 %v240
        %547 = vmatprep.subr.mxu0 %v245
        %548 = vmatpush1.msra.mxu0 %v244
        %549 = vmatprep.subr.mxu0 %v249
        %550 = vmatpush1.msra.mxu0 %v248
        %551 = vmatprep.subr.mxu0 0.0
        %552 = vmatpush1.msra.mxu0 0.0
        %553 = vmatprep.subr.mxu0 0.0
        %554 = vmatpush1.msra.mxu0 0.0
        %555 = vmatprep.subr.mxu0 0.0
        %556 = vmatpush1.msra.mxu0 0.0
        %557 = vmatprep.subr.mxu0 0.0
        %558 = vmatpush1.msra.mxu0 0.0
        %559 = vmatprep.subr.mxu0 0.0
        %560 = vmatpush1.msra.mxu0 0.0
        %561 = vmatprep.subr.mxu0 0.0
        %562 = vmatpush1.msra.mxu0 0.0
        %563 = vmatprep.subr.mxu0 0.0
        %564 = vmatpush1.msra.mxu0 0.0
        %565 = vmatprep.subr.mxu0 0.0
        %566 = vmatpush1.msra.mxu0 0.0
        %567 = vmatprep.subr.mxu0 0.0
        %568 = vmatpush1.msra.mxu0 0.0
        %569 = vmatprep.subr.mxu0 0.0
        %570 = vmatpush1.msra.mxu0 0.0
        %571 = vmatprep.subr.mxu0 0.0
        %572 = vmatpush1.msra.mxu0 0.0
        %573 = vmatprep.subr.mxu0 0.0
        %574 = vmatpush1.msra.mxu0 0.0
        %575 = vmatprep.subr.mxu0 0.0
        %576 = vmatpush1.msra.mxu0 0.0
        %577 = vmatprep.subr.mxu0 0.0
        %578 = vmatpush1.msra.mxu0 0.0
        %579 = vmatprep.subr.mxu0 0.0
        %580 = vmatpush1.msra.mxu0 0.0
        %581 = vmatprep.subr.mxu0 0.0
        %582 = vmatpush1.msra.mxu0 0.0
        %583 = vmatprep.subr.mxu0 0.0
        %584 = vmatpush1.msra.mxu0 0.0
        %585 = vmatprep.subr.mxu0 0.0
        %586 = vmatpush1.msra.mxu0 0.0
        %587 = vmatprep.subr.mxu0 0.0
        %588 = vmatpush1.msra.mxu0 0.0
        %589 = vmatprep.subr.mxu0 0.0
        %590 = vmatpush1.msra.mxu0 0.0
        %591 = vmatprep.subr.mxu0 0.0
        %592 = vmatpush1.msra.mxu0 0.0
        %593 = vmatprep.subr.mxu0 0.0
        %594 = vmatpush1.msra.mxu0 0.0
        %595 = vmatprep.subr.mxu0 0.0
        %596 = vmatpush1.msra.mxu0 0.0
        %597 = vmatprep.mubr.f32.mxu0 0.0
        %598 = vmatmul.mubr.f32.gmra.mrb[0].mxu0 %v451
        %v599 = vpop.f32.mrb[0].mxu0
        %v600 = vadd.f32 %v440, %v599
        %v601 = vpop.f32.mrb[0].mxu0
        %v602 = vadd.f32 %v442, %v601
        %603 = vmatprep.mubr.f32.mxu0 0.0
        %604 = vmatmul.mubr.f32.gmra.mrb[0].mxu0 %v454
        %v605 = vpop.f32.mrb[0].mxu0
        %v606 = vadd.f32 %v446, %v605
        %v607 = vpop.f32.mrb[0].mxu0
        %v608 = vadd.f32 %v448, %v607
        %609 = vdwg.mxu0
        %v610 = vld [vmem:[%s210 + $0x2] sm:$0xff]
        %v611 = vld [vmem:[%s210 + $0xa] sm:$0xff]
        %s612 = scalar_lea.vmem [#allocation2], 576
        %v613 = vld [vmem:[%s612] sm:$0xff]
        %v614 = vld [vmem:[%s612 + $0x8] sm:$0xff]
        %v615 = vld [vmem:[%s612 + $0x10] sm:$0xff]
        %v616 = vld [vmem:[%s612 + $0x18] sm:$0xff]
        %v617 = vld [vmem:[%s612 + $0x20] sm:$0xff]
        %v618 = vld [vmem:[%s612 + $0x28] sm:$0xff]
        %v619 = vld [vmem:[%s612 + $0x30] sm:$0xff]
        %v620 = vld [vmem:[%s612 + $0x38] sm:$0xff]
        %v621 = vld [vmem:[%s612 + $0x40] sm:$0xff]
        %v622 = vld [vmem:[%s612 + $0x48] sm:$0xff]
        %v623 = vld [vmem:[%s612 + $0x50] sm:$0xff]
        %v624 = vld [vmem:[%s612 + $0x58] sm:$0xff]
        %v625 = vld [vmem:[%s612 + $0x60] sm:$0xff]
        %v626 = vld [vmem:[%s612 + $0x68] sm:$0xff]
        %v627 = vld [vmem:[%s612 + $0x70] sm:$0xff]
        %v628 = vld [vmem:[%s612 + $0x78] sm:$0xff]
        %v629 = vld [vmem:[%s612 + $0x80] sm:$0xff]
        %v630 = vld [vmem:[%s612 + $0x88] sm:$0xff]
        %v631 = vld [vmem:[%s612 + $0x90] sm:$0xff]
        %v632 = vld [vmem:[%s612 + $0x98] sm:$0xff]
        %v633 = vld [vmem:[%s612 + $0xa0] sm:$0xff]
        %v634 = vld [vmem:[%s612 + $0xa8] sm:$0xff]
        %v635 = vld [vmem:[%s612 + $0xb0] sm:$0xff]
        %v636 = vld [vmem:[%s612 + $0xb8] sm:$0xff]
        %v637 = vld [vmem:[%s612 + $0xc0] sm:$0xff]
        %v638 = vld [vmem:[%s612 + $0xc8] sm:$0xff]
        %v639 = vld [vmem:[%s612 + $0xd0] sm:$0xff]
        %v640 = vld [vmem:[%s612 + $0xd8] sm:$0xff]
        %v641 = vld [vmem:[%s612 + $0xe0] sm:$0xff]
        %v642 = vld [vmem:[%s612 + $0xe8] sm:$0xff]
        %v643 = vld [vmem:[%s612 + $0xf0] sm:$0xff]
        %v644 = vld [vmem:[%s612 + $0xf8] sm:$0xff]
        %v645 = vld [vmem:[%s612 + $0x100] sm:$0xff]
        %v646 = vld [vmem:[%s612 + $0x108] sm:$0xff]
        %v647 = vld [vmem:[%s612 + $0x110] sm:$0xff]
        %v648 = vld [vmem:[%s612 + $0x118] sm:$0xff]
        %v650 = vsel %vm289, %v610, 0
        %v653 = vsel %vm289, %v611, 0
        %655 = vmatprep.subr.mxu0 %v614
        %656 = vmatpush1.msra.mxu0 %v613
        %657 = vmatprep.subr.mxu0 %v618
        %658 = vmatpush1.msra.mxu0 %v617
        %659 = vmatprep.subr.mxu0 %v622
        %660 = vmatpush1.msra.mxu0 %v621
        %661 = vmatprep.subr.mxu0 %v626
        %662 = vmatpush1.msra.mxu0 %v625
        %663 = vmatprep.subr.mxu0 %v630
        %664 = vmatpush1.msra.mxu0 %v629
        %665 = vmatprep.subr.mxu0 %v634
        %666 = vmatpush1.msra.mxu0 %v633
        %667 = vmatprep.subr.mxu0 %v638
        %668 = vmatpush1.msra.mxu0 %v637
        %669 = vmatprep.subr.mxu0 %v642
        %670 = vmatpush1.msra.mxu0 %v641
        %671 = vmatprep.subr.mxu0 %v646
        %672 = vmatpush1.msra.mxu0 %v645
        %673 = vmatprep.subr.mxu0 0.0
        %674 = vmatpush1.msra.mxu0 0.0
        %675 = vmatprep.subr.mxu0 0.0
        %676 = vmatpush1.msra.mxu0 0.0
        %677 = vmatprep.subr.mxu0 0.0
        %678 = vmatpush1.msra.mxu0 0.0
        %679 = vmatprep.subr.mxu0 0.0
        %680 = vmatpush1.msra.mxu0 0.0
        %681 = vmatprep.subr.mxu0 0.0
        %682 = vmatpush1.msra.mxu0 0.0
        %683 = vmatprep.subr.mxu0 0.0
        %684 = vmatpush1.msra.mxu0 0.0
        %685 = vmatprep.subr.mxu0 0.0
        %686 = vmatpush1.msra.mxu0 0.0
        %687 = vmatprep.subr.mxu0 0.0
        %688 = vmatpush1.msra.mxu0 0.0
        %689 = vmatprep.subr.mxu0 0.0
        %690 = vmatpush1.msra.mxu0 0.0
        %691 = vmatprep.subr.mxu0 0.0
        %692 = vmatpush1.msra.mxu0 0.0
        %693 = vmatprep.subr.mxu0 0.0
        %694 = vmatpush1.msra.mxu0 0.0
        %695 = vmatprep.subr.mxu0 0.0
        %696 = vmatpush1.msra.mxu0 0.0
        %697 = vmatprep.subr.mxu0 0.0
        %698 = vmatpush1.msra.mxu0 0.0
        %699 = vmatprep.subr.mxu0 0.0
        %700 = vmatpush1.msra.mxu0 0.0
        %701 = vmatprep.subr.mxu0 0.0
        %702 = vmatpush1.msra.mxu0 0.0
        %703 = vmatprep.subr.mxu0 0.0
        %704 = vmatpush1.msra.mxu0 0.0
        %705 = vmatprep.subr.mxu0 0.0
        %706 = vmatpush1.msra.mxu0 0.0
        %707 = vmatprep.subr.mxu0 0.0
        %708 = vmatpush1.msra.mxu0 0.0
        %709 = vmatprep.subr.mxu0 0.0
        %710 = vmatpush1.msra.mxu0 0.0
        %711 = vmatprep.subr.mxu0 0.0
        %712 = vmatpush1.msra.mxu0 0.0
        %713 = vmatprep.subr.mxu0 0.0
        %714 = vmatpush1.msra.mxu0 0.0
        %715 = vmatprep.subr.mxu0 0.0
        %716 = vmatpush1.msra.mxu0 0.0
        %717 = vmatprep.subr.mxu0 0.0
        %718 = vmatpush1.msra.mxu0 0.0
        %719 = vmatprep.mubr.f32.mxu0 0.0
        %720 = vmatmul.mubr.f32.gmra.mrb[0].mxu0 %v650
        %v721 = vpop.f32.mrb[0].mxu0
        %v722 = vadd.f32 0.0, %v721
        %v723 = vpop.f32.mrb[0].mxu0
        %v724 = vadd.f32 0.0, %v723
        %725 = vmatprep.mubr.f32.mxu0 0.0
        %726 = vmatmul.mubr.f32.gmra.mrb[0].mxu0 %v653
        %v727 = vpop.f32.mrb[0].mxu0
        %v728 = vadd.f32 0.0, %v727
        %v729 = vpop.f32.mrb[0].mxu0
        %v730 = vadd.f32 0.0, %v729
        %731 = vdwg.mxu0
        %732 = vmatprep.subr.mxu0 %v616
        %733 = vmatpush1.msra.mxu0 %v615
        %734 = vmatprep.subr.mxu0 %v620
        %735 = vmatpush1.msra.mxu0 %v619
        %736 = vmatprep.subr.mxu0 %v624
        %737 = vmatpush1.msra.mxu0 %v623
        %738 = vmatprep.subr.mxu0 %v628
        %739 = vmatpush1.msra.mxu0 %v627
        %740 = vmatprep.subr.mxu0 %v632
        %741 = vmatpush1.msra.mxu0 %v631
        %742 = vmatprep.subr.mxu0 %v636
        %743 = vmatpush1.msra.mxu0 %v635
        %744 = vmatprep.subr.mxu0 %v640
        %745 = vmatpush1.msra.mxu0 %v639
        %746 = vmatprep.subr.mxu0 %v644
        %747 = vmatpush1.msra.mxu0 %v643
        %748 = vmatprep.subr.mxu0 %v648
        %749 = vmatpush1.msra.mxu0 %v647
        %750 = vmatprep.subr.mxu0 0.0
        %751 = vmatpush1.msra.mxu0 0.0
        %752 = vmatprep.subr.mxu0 0.0
        %753 = vmatpush1.msra.mxu0 0.0
        %754 = vmatprep.subr.mxu0 0.0
        %755 = vmatpush1.msra.mxu0 0.0
        %756 = vmatprep.subr.mxu0 0.0
        %757 = vmatpush1.msra.mxu0 0.0
        %758 = vmatprep.subr.mxu0 0.0
        %759 = vmatpush1.msra.mxu0 0.0
        %760 = vmatprep.subr.mxu0 0.0
        %761 = vmatpush1.msra.mxu0 0.0
        %762 = vmatprep.subr.mxu0 0.0
        %763 = vmatpush1.msra.mxu0 0.0
        %764 = vmatprep.subr.mxu0 0.0
        %765 = vmatpush1.msra.mxu0 0.0
        %766 = vmatprep.subr.mxu0 0.0
        %767 = vmatpush1.msra.mxu0 0.0
        %768 = vmatprep.subr.mxu0 0.0
        %769 = vmatpush1.msra.mxu0 0.0
        %770 = vmatprep.subr.mxu0 0.0
        %771 = vmatpush1.msra.mxu0 0.0
        %772 = vmatprep.subr.mxu0 0.0
        %773 = vmatpush1.msra.mxu0 0.0
        %774 = vmatprep.subr.mxu0 0.0
        %775 = vmatpush1.msra.mxu0 0.0
        %776 = vmatprep.subr.mxu0 0.0
        %777 = vmatpush1.msra.mxu0 0.0
        %778 = vmatprep.subr.mxu0 0.0
        %779 = vmatpush1.msra.mxu0 0.0
        %780 = vmatprep.subr.mxu0 0.0
        %781 = vmatpush1.msra.mxu0 0.0
        %782 = vmatprep.subr.mxu0 0.0
        %783 = vmatpush1.msra.mxu0 0.0
        %784 = vmatprep.subr.mxu0 0.0
        %785 = vmatpush1.msra.mxu0 0.0
        %786 = vmatprep.subr.mxu0 0.0
        %787 = vmatpush1.msra.mxu0 0.0
        %788 = vmatprep.subr.mxu0 0.0
        %789 = vmatpush1.msra.mxu0 0.0
        %790 = vmatprep.subr.mxu0 0.0
        %791 = vmatpush1.msra.mxu0 0.0
        %792 = vmatprep.subr.mxu0 0.0
        %793 = vmatpush1.msra.mxu0 0.0
        %794 = vmatprep.subr.mxu0 0.0
        %795 = vmatpush1.msra.mxu0 0.0
        %796 = vmatprep.mubr.f32.mxu0 0.0
        %797 = vmatmul.mubr.f32.gmra.mrb[0].mxu0 %v650
        %v798 = vpop.f32.mrb[0].mxu0
        %v799 = vadd.f32 0.0, %v798
        %v800 = vpop.f32.mrb[0].mxu0
        %v801 = vadd.f32 0.0, %v800
        %802 = vmatprep.mubr.f32.mxu0 0.0
        %803 = vmatmul.mubr.f32.gmra.mrb[0].mxu0 %v653
        %v804 = vpop.f32.mrb[0].mxu0
        %v805 = vadd.f32 0.0, %v804
        %v806 = vpop.f32.mrb[0].mxu0
        %v807 = vadd.f32 0.0, %v806
        %808 = vdwg.mxu0
        %v809 = vadd.f32 %v523, %v722
        %v810 = vadd.f32 %v525, %v724
        %v811 = vadd.f32 %v600, %v799
        %v812 = vadd.f32 %v602, %v801
        %v813 = vadd.f32 %v529, %v728
        %v814 = vadd.f32 %v531, %v730
        %v815 = vadd.f32 %v606, %v805
        %v816 = vadd.f32 %v608, %v807
        %v817 = vld [vmem:[%s2] sm:$0xf]
        %v819 = vlaneseq
        %v820 = vshrl.u32 %v819, 7
        %v821 = vsub.s32 0, %v820
        %v822 = vrot.slane %v817, %v821
        %v823 = vlaneseq
        %v824 = vshrl.u32 %v823, 7
        %v825 = vsub.s32 1, %v824
        %v826 = vrot.slane %v817, %v825
        %v827 = vlaneseq
        %v828 = vshrl.u32 %v827, 7
        %v829 = vsub.s32 2, %v828
        %v830 = vrot.slane %v817, %v829
        %v831 = vlaneseq
        %v832 = vshrl.u32 %v831, 7
        %v833 = vsub.s32 3, %v832
        %v834 = vrot.slane %v817, %v833
        %v839 = vmul.f32 %v809, %v822
        %v840 = vmul.f32 %v810, %v826
        %v841 = vmul.f32 %v811, %v830
        %v842 = vmul.f32 %v812, %v834
        %v843 = vmul.f32 %v813, %v822
        %v844 = vmul.f32 %v814, %v826
        %v845 = vmul.f32 %v815, %v830
        %v846 = vmul.f32 %v816, %v834
        %v847 = vld [vmem:[%s3] sm:$0xf]
        %v849 = vlaneseq
        %v850 = vshrl.u32 %v849, 7
        %v851 = vsub.s32 0, %v850
        %v852 = vrot.slane %v847, %v851
        %v853 = vlaneseq
        %v854 = vshrl.u32 %v853, 7
        %v855 = vsub.s32 1, %v854
        %v856 = vrot.slane %v847, %v855
        %v857 = vlaneseq
        %v858 = vshrl.u32 %v857, 7
        %v859 = vsub.s32 2, %v858
        %v860 = vrot.slane %v847, %v859
        %v861 = vlaneseq
        %v862 = vshrl.u32 %v861, 7
        %v863 = vsub.s32 3, %v862
        %v864 = vrot.slane %v847, %v863
        %v869 = vadd.f32 %v839, %v852
        %v870 = vadd.f32 %v840, %v856
        %v871 = vadd.f32 %v841, %v860
        %v872 = vadd.f32 %v842, %v864
        %v873 = vadd.f32 %v843, %v852
        %v874 = vadd.f32 %v844, %v856
        %v875 = vadd.f32 %v845, %v860
        %v876 = vadd.f32 %v846, %v864
        %v877 = vmax.f32 %v869, 0.0
        %v878 = vmax.f32 %v870, 0.0
        %v879 = vmax.f32 %v871, 0.0
        %v880 = vmax.f32 %v872, 0.0
        %v881 = vmax.f32 %v873, 0.0
        %v882 = vmax.f32 %v874, 0.0
        %v883 = vmax.f32 %v875, 0.0
        %v884 = vmax.f32 %v876, 0.0
        %885 = vst [vmem:[%s205] sm:$0xff] %v877
        %886 = vst [vmem:[%s205 + $0x8] sm:$0xff] %v878
        %887 = vst [vmem:[%s205 + $0x10] sm:$0xff] %v879
        %888 = vst [vmem:[%s205 + $0x18] sm:$0xff] %v880
        %889 = vst [vmem:[%s205 + $0x20] sm:$0xff] %v881
        %890 = vst [vmem:[%s205 + $0x28] sm:$0xff] %v882
        %891 = vst [vmem:[%s205 + $0x30] sm:$0xff] %v883
        %892 = vst [vmem:[%s205 + $0x38] sm:$0xff] %v884
        %s893 = sand.u32 %s116, 1
        %s894 = scalar_lea.sflag [#allocation4], %s893
        %s895 = sand.u32 %s116, 1
        %s896 = smul.addr %s895, 64
        %s897 = scalar_lea.vmem [#allocation5], %s896
        // Predicated region
        $region41: #{tpu_custom_call.1} parent=35 // pred_check
          %p898 = pneg %p126
        $region42: #{tpu_custom_call.1} parent=35 // pred_check_branch
          %900 = sbr.rel (%p898) target = $region44
        $region43: #{tpu_custom_call.1} parent=35 // pred_region
          %s901 = smul.u32 2, %s19
          %s903 = ssub.s32 1024, 1024
          %904 = vsyncadd %s894, %s903
          %s905 = smul.addr %s901, 4
          %s906 = smul.addr %s905, 128
          %s907 = scalar_lea.hbm %s4, %s906
          %s908 = sshll.u32 %s897, 4
          %s909 = int_to_ptr.vmem [resolvable:$true] %s908
          %914 = dma.vmem_to_hbm [thread:$0]  %s909, 1024, %s907, %s894, 512, 512, 32
        $region44: #{tpu_custom_call.1} parent=35 // pred_fallthru
          _
      $region36: #{tpu_custom_call.1} parent=5 // pred_fallthru
        _
      %p915 = scmp.le.s32.totalorder 2, %s14
      // Predicated region
      $region45: #{tpu_custom_call.1} parent=5 // pred_check
        %p916 = pneg %p915
      $region46: #{tpu_custom_call.1} parent=5 // pred_check_branch
        %918 = sbr.rel (%p916) target = $region48
      $region47: #{tpu_custom_call.1} parent=5 // pred_region
        %s919 = ssub.s32 %s14, 2
        // Predicated region
        $region49: #{tpu_custom_call.1} parent=47 // pred_check
          %p920 = pneg %p132
        $region50: #{tpu_custom_call.1} parent=47 // pred_check_branch
          %922 = sbr.rel (%p920) target = $region52
        $region51: #{tpu_custom_call.1} parent=47 // pred_region
          %s923 = sand.u32 %s117, 1
          %s924 = scalar_lea.sflag [#allocation4], %s923
          %s925 = sand.u32 %s117, 1
          %s926 = smul.addr %s925, 64
          %s927 = scalar_lea.vmem [#allocation5], %s926
          %928 = dma.done %s924, 1024
        $region52: #{tpu_custom_call.1} parent=47 // pred_fallthru
          _
      $region48: #{tpu_custom_call.1} parent=5 // pred_fallthru
        _
    $region6: #{tpu_custom_call.1} parent=1 // loop_footer
      %s18 = sadd.s32 1, %s14
    $region7: #{tpu_custom_call.1} parent=1 // loop_footer_branch
      %13 = sbr.rel target = $region3
    $region8: #{tpu_custom_call.1} parent=1 // loop_exit
      _
    %929 = vsyncpa [#allocation3], 1
    %s930 = scalar_lea.sflag [#allocation3], 1
    %931 = vsyncpa %s930, 1
    %932 = vsyncpa [#allocation4], 1
    %s933 = scalar_lea.sflag [#allocation4], 1
    %934 = vsyncpa %s933, 1

</llo_original>
